<compile_context>
chip_gen: v5e
topology: v5e:2x2
jax: 0.10.0
libtpu: 0.0.40
codegen_flags: <defaults>
</compile_context>

<pallas_src>
import jax
import jax.numpy as jnp
from jax.experimental import pallas as pl
from jax.experimental.pallas import tpu as pltpu

_LANE_CAP = 512                 # lane width cap: keeps the row axis tileable
_TILE_BYTES = 2 * 1024 * 1024   # ~2 MiB per buffer; 4 pipelined buffers ~= 8 MiB
_SPLIT_MIN_BYTES = 256 * 1024   # below this, a single grid step (overhead dominates)


def _hswish_kernel(x_ref, o_ref):
    x = x_ref[...]
    # relu6(x + 3) == clamp(x + 3, 0, 6); pure VPU work, HBM-bandwidth bound.
    r6 = jnp.clip(x + 3.0, 0.0, 6.0)
    o_ref[...] = x * r6 * (1.0 / 6.0)


def _pick_lane(total):
    """Largest multiple of 128 (<= _LANE_CAP) that divides `total`, else None."""
    for k in range(_LANE_CAP // 128, 0, -1):
        lane = 128 * k
        if total % lane == 0:
            return lane
    return None


def _sublane_pack(dtype):
    # Native sublane packing: f32 -> 8, bf16/f16 -> 16, int8/fp8 -> 32.
    return {4: 8, 2: 16, 1: 32}.get(jnp.dtype(dtype).itemsize, 8)


def hswish(x):
    """Elementwise hard-swish matching _Hswish.forward (any shape/layout)."""
    orig_shape = x.shape
    total = int(x.size)
    if total == 0:
        return x
    if not jnp.issubdtype(x.dtype, jnp.floating):
        # Non-float inputs are not a meaningful case for hswish; keep semantics
        # with a plain XLA expression rather than a float-constant kernel.
        return (x * jnp.clip(x + 3.0, 0.0, 6.0) / 6.0).astype(x.dtype)

    itemsize = jnp.dtype(x.dtype).itemsize
    pack = _sublane_pack(x.dtype)

    flat = x.reshape(-1)
    lane = _pick_lane(total)
    padded_total = total
    if lane is None:
        # Fallback: pad only to the next multiple of 128 (< 128 dead elements).
        lane = 128
        padded_total = pl.cdiv(total, lane) * lane
        flat = jnp.pad(flat, (0, padded_total - total))

    rows = padded_total // lane
    x2d = flat.reshape(rows, lane)

    # Byte-budgeted, dtype-aware tile rows (multiple of the native sublane pack).
    budget_rows = max(pack, (_TILE_BYTES // (lane * itemsize)) // pack * pack)
    if rows <= pack or padded_total * itemsize < _SPLIT_MIN_BYTES:
        tile_r = rows  # tiny tensor: one full-array tile (full dims always legal)
    else:
        # >= 2 tiles so the "parallel" axis can use v7x's second TensorCore.
        half = pl.cdiv(pl.cdiv(rows, 2), pack) * pack
        tile_r = max(pack, min(budget_rows, half))
    n_tiles = pl.cdiv(rows, tile_r)  # ragged last block is masked by Pallas

    out2d = pl.pallas_call(
        _hswish_kernel,
        out_shape=jax.ShapeDtypeStruct((rows, lane), x.dtype),
        grid=(n_tiles,),
        in_specs=[pl.BlockSpec((tile_r, lane), lambda i: (i, 0))],
        out_specs=pl.BlockSpec((tile_r, lane), lambda i: (i, 0)),
        compiler_params=pltpu.CompilerParams(
            dimension_semantics=("parallel",),
        ),
        cost_estimate=pl.CostEstimate(
            flops=5 * total,
            transcendentals=0,
            bytes_accessed=2 * total * itemsize,
        ),
    )(x2d)

    out_flat = out2d.reshape(-1)
    if padded_total != total:
        out_flat = out_flat[:total]
    return out_flat.reshape(orig_shape)


if __name__ == "__main__":
    key = jax.random.PRNGKey(0)
    # NCHW, consistent with a conv-net activation: batch=2, channels=4, 16x16
    x = jax.random.normal(key, (2, 4, 16, 16), dtype=jnp.float32) * 4.0

    out = hswish(x)
    out = jax.block_until_ready(out)

    # Reference check (plain JAX)
    ref = x * jnp.clip(x + 3.0, 0.0, 6.0) / 6.0
    assert out.shape == x.shape and out.dtype == x.dtype
    assert jnp.allclose(out, ref, atol=1e-6, rtol=1e-6)

    print("KERNEL_OK")
</pallas_src>

<mosaic_0001>
module attributes {stable_mosaic.version = 11 : i64} {
  func.func @_hswish_kernel(%arg0: i32, %arg1: memref<4x512xf32, #tpu.memory_space<vmem>>, %arg2: memref<4x512xf32, #tpu.memory_space<vmem>>) attributes {dimension_semantics = [#tpu.dimension_semantics<parallel>], iteration_bounds = array<i64: 1>, scalar_prefetch = 0 : i64, scratch_operands = 0 : i64, tpu.core_type = #tpu.core_type<tc>, window_params = [{transform_indices = @transform_0, window_bounds = array<i64: 4, 512>}, {transform_indices = @transform_1, window_bounds = array<i64: 4, 512>}]} {
    %c0 = arith.constant 0 : index
    %c0_0 = arith.constant 0 : index
    %0 = vector.load %arg1[%c0, %c0_0] : memref<4x512xf32, #tpu.memory_space<vmem>>, vector<4x512xf32>
    %cst = arith.constant 3.000000e+00 : f32
    %1 = vector.broadcast %cst : f32 to vector<4x512xf32>
    %2 = arith.addf %0, %1 : vector<4x512xf32>
    %cst_1 = arith.constant 0.000000e+00 : f32
    %cst_2 = arith.constant 6.000000e+00 : f32
    %3 = vector.broadcast %cst_1 : f32 to vector<4x512xf32>
    %4 = arith.maximumf %3, %2 : vector<4x512xf32>
    %5 = vector.broadcast %cst_2 : f32 to vector<4x512xf32>
    %6 = arith.minimumf %5, %4 : vector<4x512xf32>
    %7 = arith.mulf %0, %6 : vector<4x512xf32>
    %cst_3 = arith.constant 0.166666672 : f32
    %8 = vector.broadcast %cst_3 : f32 to vector<4x512xf32>
    %9 = arith.mulf %7, %8 : vector<4x512xf32>
    %c0_4 = arith.constant 0 : index
    %c0_5 = arith.constant 0 : index
    %10 = vector.load %arg2[%c0_4, %c0_5] : memref<4x512xf32, #tpu.memory_space<vmem>>, vector<4x512xf32>
    tpu.vector_store %arg2[%c0_4, %c0_5], %9 {strides = array<i32>} : memref<4x512xf32, #tpu.memory_space<vmem>>, vector<4x512xf32>,
    return
  }
  func.func @transform_0(%arg0: i32) -> (i32, i32) {
    %c0_i32 = arith.constant 0 : i32
    %c0_i32_0 = arith.constant 0 : i32
    return %arg0, %c0_i32 : i32, i32
  }
  func.func @transform_1(%arg0: i32) -> (i32, i32) {
    %c0_i32 = arith.constant 0 : i32
    %c0_i32_0 = arith.constant 0 : i32
    return %arg0, %c0_i32 : i32, i32
  }
}

</mosaic_0001>

<llo_original>
// kernel: tpu_custom_call.1
$region0: #{tpu_custom_call.1}
  #allocation0 [shape = 'u32[]', space=smem, size = 0x4, offset = 0x4, fixed_abs, tag = 'smem constant byte address 0x4 - core index']
  #allocation1 [shape = 'u32[72,128]{1,0:T(1,128)}', space=vmem, size = 0x9000, scoped, tag = 'internal scratch']
  %s0 = inlined_call_operand.hbm [shape: f32[4,512], index: 0, kind: input, shape index: {}]
  %s1 = inlined_call_operand.hbm [shape: f32[4,512], index: 1, kind: output, shape index: {}]
  %s2 = sld [smem:[#allocation0]]
  $region18: #{tpu_custom_call.1} parent=0
    _
  %s4 = ssub.s32 1, %s2
  %s5 = scalar_select 0, %s4, %s2
  $region1: #{tpu_custom_call.1} parent=0
    #allocation2 [shape = 'u8[8192]{0}', space=vmem, size = 0x2000, scoped, tag = 'input window, operand 0, single buffered']
    #allocation3 [shape = 's32[1]{0}', space=sflag, size = 0x4, scoped, tag = 'scoped memory for tpu_custom_call.1']
    #allocation4 [shape = 's32[1]{0}', space=sflag, size = 0x4, scoped, tag = 'scoped memory for tpu_custom_call.1']
    #allocation5 [shape = 'u8[8192]{0}', space=vmem, size = 0x2000, scoped, tag = 'output window, operand 0, single buffered']
    %6 = vsyncpa [#allocation3], 0
    %7 = vsyncpa [#allocation4], 0
    // Predicated region
    $region2: #{tpu_custom_call.1} parent=1 // pred_check
      _
    $region3: #{tpu_custom_call.1} parent=1 // pred_check_branch
      %9 = sbr.rel (0) target = $region5
    $region4: #{tpu_custom_call.1} parent=1 // pred_region
      %11 = vsyncadd [#allocation3], 0
      %s13 = sshll.u32 %s0, 4
      %s14 = int_to_ptr.hbm [resolvable:$true] %s13
      %s15 = sshll.u32 [#allocation2], 4
      %s16 = int_to_ptr.vmem [resolvable:$true] %s15
      %18 = dma.hbm_to_vmem [thread:$0]  %s14, 256, %s16, [#allocation3]
    $region5: #{tpu_custom_call.1} parent=1 // pred_fallthru
      _
    // Predicated region
    $region6: #{tpu_custom_call.1} parent=1 // pred_check
      _
    $region7: #{tpu_custom_call.1} parent=1 // pred_check_branch
      %20 = sbr.rel (0) target = $region9
    $region8: #{tpu_custom_call.1} parent=1 // pred_region
      %22 = dma.done [#allocation3], 256
    $region9: #{tpu_custom_call.1} parent=1 // pred_fallthru
      _
    %v23 = vld [vmem:[#allocation2] sm:$0xff]
    %v24 = vld [vmem:[#allocation2 + $0x8] sm:$0xff]
    %v25 = vadd.f32 %v23, 3.0
    %v26 = vadd.f32 %v24, 3.0
    %v27 = vmax.f32 %v25, 0.0
    %v28 = vmax.f32 %v26, 0.0
    %v29 = vmin.f32 %v27, 6.0
    %v30 = vmin.f32 %v28, 6.0
    %v31 = vmul.f32 %v23, %v29
    %v32 = vmul.f32 %v24, %v30
    %v33 = vmul.f32 %v31, 0.16666667
    %v34 = vmul.f32 %v32, 0.16666667
    %35 = vst [vmem:[#allocation5] sm:$0xff] %v33
    %36 = vst [vmem:[#allocation5 + $0x8] sm:$0xff] %v34
    // Predicated region
    $region10: #{tpu_custom_call.1} parent=1 // pred_check
      _
    $region11: #{tpu_custom_call.1} parent=1 // pred_check_branch
      %38 = sbr.rel (0) target = $region13
    $region12: #{tpu_custom_call.1} parent=1 // pred_region
      %40 = vsyncadd [#allocation4], 0
      %s42 = sshll.u32 [#allocation5], 4
      %s43 = int_to_ptr.vmem [resolvable:$true] %s42
      %s44 = sshll.u32 %s1, 4
      %s45 = int_to_ptr.hbm [resolvable:$true] %s44
      %47 = dma.vmem_to_hbm [thread:$0]  %s43, 256, %s45, [#allocation4]
    $region13: #{tpu_custom_call.1} parent=1 // pred_fallthru
      _
    // Predicated region
    $region14: #{tpu_custom_call.1} parent=1 // pred_check
      _
    $region15: #{tpu_custom_call.1} parent=1 // pred_check_branch
      %49 = sbr.rel (0) target = $region17
    $region16: #{tpu_custom_call.1} parent=1 // pred_region
      %51 = dma.done [#allocation4], 256
    $region17: #{tpu_custom_call.1} parent=1 // pred_fallthru
      _
    %52 = vsyncpa [#allocation3], 1
    %53 = vsyncpa [#allocation4], 1

</llo_original>
